<compile_context>
chip_gen: v5e
topology: v5e:2x2
jax: 0.10.0
libtpu: 0.0.40
codegen_flags: <defaults>
</compile_context>

<pallas_src>
import jax
import jax.numpy as jnp
from jax.experimental import pallas as pl
from jax.experimental.pallas import tpu as pltpu

KSIZE = 3
STRIDE = 2


def _downsample_conv_kernel(xe_ref, xo_ref, w_ref, b_ref, o_ref):
    # xe_ref: (NB, C_in, L_out)   even-index samples  x[:, :, 0::2]
    # xo_ref: (NB, C_in, L_out)   odd-index samples   x[:, :, 1::2]
    # w_ref:  (C_out, 3*C_in)     [W_k0 | W_k1 | W_k2]
    # b_ref:  (C_out, 1)
    # o_ref:  (NB, C_out, L_out)
    nb, c_in, l_out = xe_ref.shape

    # Hoisted: read weights / bias once per grid step, not per batch element.
    w = w_ref[...]
    b = b_ref[...]
    zero_col = jnp.zeros((c_in, 1), xe_ref.dtype)

    for i in range(nb):  # nb is small and static -> unrolled
        xe = xe_ref[i]                                   # (C_in, L_out)  tap k=1
        xo = xo_ref[i]                                   # (C_in, L_out)  tap k=2
        # tap k=0 operand: x_pad[2t] = x[2t-1] = x_odd[t-1]; zero at t=0 (left pad).
        xo_sh = jnp.concatenate([zero_col, xo[:, : l_out - 1]], axis=1)
        # im2col: one MXU matmul with K = 3*C_in instead of 3 tiny-K matmuls.
        xcat = jnp.concatenate([xo_sh, xe, xo], axis=0)  # (3*C_in, L_out)
        acc = jnp.dot(w, xcat, preferred_element_type=jnp.float32)
        o_ref[i] = (acc + b).astype(o_ref.dtype)


def _pick_block_batch(n, c_in, c_out, l_out, itemsize):
    """Batch elements per grid step: a few MiB of double-buffered VMEM, >= 2 grid steps."""
    per_b = (2 * c_in + c_out) * l_out * itemsize * 2   # 2 inputs + 1 output, double-buffered
    nb = max(1, min(n, (4 << 20) // max(per_b, 1), 16))
    if n >= 2:
        nb = min(nb, max(1, n // 2))   # keep at least 2 grid steps (megacore / 2 TCs)
    while n % nb:                       # full blocks only
        nb -= 1
    return nb


@jax.jit
def downsample(x_ncl, weight_oik, bias):
    """Matches Downsample(in_channels, with_conv=True).forward.

    x_ncl:      (N, C, L) float32  -- PyTorch NCL input layout
    weight_oik: (C_out, C_in, K=3) -- torch Conv1d weight layout
    bias:       (C_out,)
    returns:    (N, C_out, L_out)  with L_out = (L + 2 - 3) // 2 + 1
    """
    n, c_in, l = x_ncl.shape
    c_out = weight_oik.shape[0]
    l_out = (l + 2 - KSIZE) // STRIDE + 1

    # Odd L: append one zero column (this IS the conv's right zero pad, which is
    # only read when L is odd). For even L (the DiffTraj case) x is never rewritten.
    if l % 2 == 1:
        x_ncl = jnp.pad(x_ncl, ((0, 0), (0, 0), (0, 1)))

    # Free (layout-preserving) reshape + parity split; fuses into one cheap XLA
    # pass. Replaces the previous transpose + pad + transpose (3 full HBM passes).
    x_pair = x_ncl.reshape(n, c_in, x_ncl.shape[-1] // 2, 2)
    x_even = x_pair[..., 0]            # (N, C_in, L_out) == x[:, :, 0::2]
    x_odd = x_pair[..., 1]             # (N, C_in, L_out) == x[:, :, 1::2]

    # Fold the 3 taps into a single K = 3*C_in contraction: [W_k0 | W_k1 | W_k2].
    w_cat = jnp.concatenate(
        [weight_oik[:, :, 0], weight_oik[:, :, 1], weight_oik[:, :, 2]], axis=1)
    b_col = bias.reshape(c_out, 1)

    nb = _pick_block_batch(n, c_in, c_out, l_out, x_ncl.dtype.itemsize)
    grid = (n // nb,)

    return pl.pallas_call(
        _downsample_conv_kernel,
        out_shape=jax.ShapeDtypeStruct((n, c_out, l_out), x_ncl.dtype),
        grid=grid,
        in_specs=[
            pl.BlockSpec((nb, c_in, l_out), lambda i: (i, 0, 0)),
            pl.BlockSpec((nb, c_in, l_out), lambda i: (i, 0, 0)),
            pl.BlockSpec((c_out, KSIZE * c_in), lambda i: (0, 0)),
            pl.BlockSpec((c_out, 1), lambda i: (0, 0)),
        ],
        out_specs=pl.BlockSpec((nb, c_out, l_out), lambda i: (i, 0, 0)),
        compiler_params=pltpu.CompilerParams(dimension_semantics=("parallel",)),
    )(x_even, x_odd, w_cat, b_col)


if __name__ == "__main__":
    key = jax.random.PRNGKey(0)
    k_x, k_w, k_b = jax.random.split(key, 3)

    # Small shapes consistent with the module: Conv1d over (N, C, L)
    N, C, L = 2, 4, 16
    x = jax.random.normal(k_x, (N, C, L), dtype=jnp.float32)

    # Deterministic parameter init mimicking torch Conv1d default (uniform +/- 1/sqrt(fan_in)).
    fan_in = C * KSIZE
    bound = 1.0 / (fan_in ** 0.5)
    weight = jax.random.uniform(k_w, (C, C, KSIZE), minval=-bound, maxval=bound,
                                dtype=jnp.float32)
    bias = jax.random.uniform(k_b, (C,), minval=-bound, maxval=bound,
                              dtype=jnp.float32)

    out = jax.block_until_ready(downsample(x, weight, bias))

    # Reference: pad (1,1) + Conv1d(k=3, stride=2), computed at HIGHEST precision.
    ref = jax.lax.conv_general_dilated(
        x, weight, window_strides=(STRIDE,), padding=[(1, 1)],
        dimension_numbers=("NCH", "OIH", "NCH"),
        precision=jax.lax.Precision.HIGHEST)
    ref = ref + bias[None, :, None]

    l_out = (L + 2 - KSIZE) // STRIDE + 1
    assert out.shape == (N, C, l_out), out.shape
    assert jnp.allclose(out, ref, atol=5e-3, rtol=5e-3), float(jnp.max(jnp.abs(out - ref)))
    print("KERNEL_OK")
</pallas_src>

<mosaic_0001>
module attributes {stable_mosaic.version = 11 : i64} {
  func.func @_downsample_conv_kernel(%arg0: i32, %arg1: memref<1x4x8xf32, #tpu.memory_space<vmem>>, %arg2: memref<1x4x8xf32, #tpu.memory_space<vmem>>, %arg3: memref<4x12xf32, #tpu.memory_space<vmem>>, %arg4: memref<4x1xf32, #tpu.memory_space<vmem>>, %arg5: memref<1x4x8xf32, #tpu.memory_space<vmem>>) attributes {dimension_semantics = [#tpu.dimension_semantics<parallel>], iteration_bounds = array<i64: 2>, scalar_prefetch = 0 : i64, scratch_operands = 0 : i64, tpu.core_type = #tpu.core_type<tc>, window_params = [{transform_indices = @transform_0, window_bounds = array<i64: 1, 4, 8>}, {transform_indices = @transform_1, window_bounds = array<i64: 1, 4, 8>}, {pipeline_mode = #tpu.pipeline_mode<synchronous>, transform_indices = @transform_2, window_bounds = array<i64: 4, 12>}, {pipeline_mode = #tpu.pipeline_mode<synchronous>, transform_indices = @transform_3, window_bounds = array<i64: 4, 1>}, {transform_indices = @transform_4, window_bounds = array<i64: 1, 4, 8>}]} {
    %c0 = arith.constant 0 : index
    %c0_0 = arith.constant 0 : index
    %0 = vector.load %arg3[%c0, %c0_0] : memref<4x12xf32, #tpu.memory_space<vmem>>, vector<4x12xf32>
    %c0_1 = arith.constant 0 : index
    %c0_2 = arith.constant 0 : index
    %1 = vector.load %arg4[%c0_1, %c0_2] : memref<4x1xf32, #tpu.memory_space<vmem>>, vector<4x1xf32>
    %cst = arith.constant 0.000000e+00 : f32
    %2 = vector.broadcast %cst : f32 to vector<4x1xf32>
    %c0_3 = arith.constant 0 : index
    %c0_4 = arith.constant 0 : index
    %c0_5 = arith.constant 0 : index
    %3 = vector.load %arg1[%c0_3, %c0_4, %c0_5] : memref<1x4x8xf32, #tpu.memory_space<vmem>>, vector<1x4x8xf32>
    %4 = vector.shape_cast %3 : vector<1x4x8xf32> to vector<4x8xf32>
    %c0_6 = arith.constant 0 : index
    %c0_7 = arith.constant 0 : index
    %c0_8 = arith.constant 0 : index
    %5 = vector.load %arg2[%c0_6, %c0_7, %c0_8] : memref<1x4x8xf32, #tpu.memory_space<vmem>>, vector<1x4x8xf32>
    %6 = vector.shape_cast %5 : vector<1x4x8xf32> to vector<4x8xf32>
    %7 = vector.extract_strided_slice %6 {offsets = [0, 0], sizes = [4, 7], strides = [1, 1]} : vector<4x8xf32> to vector<4x7xf32>
    %8 = tpu.concatenate %2, %7 in 1 : vector<4x1xf32>, vector<4x7xf32> -> vector<4x8xf32>
    %9 = tpu.concatenate %8, %4, %6 in 0 : vector<4x8xf32>, vector<4x8xf32>, vector<4x8xf32> -> vector<12x8xf32>
    %cst_9 = arith.constant dense<0.000000e+00> : vector<4x8xf32>
    %10 = tpu.matmul %0, %9, %cst_9 {dimension_numbers = #tpu.dot_dimension_numbers<[1], [0], [0], [1], [0, 0, 1, 1], [], []>} : vector<4x12xf32>, vector<12x8xf32>, vector<4x8xf32> -> vector<4x8xf32>
    %11 = vector.broadcast %1 : vector<4x1xf32> to vector<4x8xf32>
    %12 = arith.addf %10, %11 : vector<4x8xf32>
    %c0_10 = arith.constant 0 : index
    %c0_11 = arith.constant 0 : index
    %c0_12 = arith.constant 0 : index
    %13 = vector.load %arg5[%c0_10, %c0_11, %c0_12] : memref<1x4x8xf32, #tpu.memory_space<vmem>>, vector<1x4x8xf32>
    %14 = vector.shape_cast %13 : vector<1x4x8xf32> to vector<4x8xf32>
    %15 = vector.shape_cast %12 : vector<4x8xf32> to vector<1x4x8xf32>
    tpu.vector_store %arg5[%c0_10, %c0_11, %c0_12], %15 {strides = array<i32>} : memref<1x4x8xf32, #tpu.memory_space<vmem>>, vector<1x4x8xf32>,
    return
  }
  func.func @transform_0(%arg0: i32) -> (i32, i32, i32) {
    %c0_i32 = arith.constant 0 : i32
    %c0_i32_0 = arith.constant 0 : i32
    %c0_i32_1 = arith.constant 0 : i32
    return %arg0, %c0_i32, %c0_i32_0 : i32, i32, i32
  }
  func.func @transform_1(%arg0: i32) -> (i32, i32, i32) {
    %c0_i32 = arith.constant 0 : i32
    %c0_i32_0 = arith.constant 0 : i32
    %c0_i32_1 = arith.constant 0 : i32
    return %arg0, %c0_i32, %c0_i32_0 : i32, i32, i32
  }
  func.func @transform_2(%arg0: i32) -> (i32, i32) {
    %c0_i32 = arith.constant 0 : i32
    %c0_i32_0 = arith.constant 0 : i32
    %c0_i32_1 = arith.constant 0 : i32
    return %c0_i32, %c0_i32_0 : i32, i32
  }
  func.func @transform_3(%arg0: i32) -> (i32, i32) {
    %c0_i32 = arith.constant 0 : i32
    %c0_i32_0 = arith.constant 0 : i32
    %c0_i32_1 = arith.constant 0 : i32
    return %c0_i32, %c0_i32_0 : i32, i32
  }
  func.func @transform_4(%arg0: i32) -> (i32, i32, i32) {
    %c0_i32 = arith.constant 0 : i32
    %c0_i32_0 = arith.constant 0 : i32
    %c0_i32_1 = arith.constant 0 : i32
    return %arg0, %c0_i32, %c0_i32_0 : i32, i32, i32
  }
}

</mosaic_0001>

<llo_original>
// kernel: downsample.1
$region0: #{downsample.1}
  #allocation0 [shape = 'u32[]', space=smem, size = 0x4, offset = 0x4, fixed_abs, tag = 'smem constant byte address 0x4 - core index']
  #allocation1 [shape = 'u32[72,128]{1,0:T(1,128)}', space=vmem, size = 0x9000, scoped, tag = 'internal scratch']
  %s0 = inlined_call_operand.vmem [shape: f32[2,4,8], index: 0, kind: input, shape index: {}]
  %s1 = inlined_call_operand.vmem [shape: f32[2,4,8], index: 1, kind: input, shape index: {}]
  %s2 = inlined_call_operand.vmem [shape: f32[4,12], index: 2, kind: input, shape index: {}]
  %s3 = inlined_call_operand.vmem [shape: f32[4,1], index: 3, kind: input, shape index: {}]
  %s4 = inlined_call_operand.hbm [shape: f32[2,4,8], index: 4, kind: output, shape index: {}]
  %s5 = sld [smem:[#allocation0]]
  $region49: #{downsample.1} parent=0
    _
  %s7 = ssub.s32 1, %s5
  %s8 = scalar_select 0, %s7, %s5
  $region1: #{downsample.1} parent=0
    #allocation2 [shape = 'u8[4096]{0}', space=vmem, size = 0x1000, scoped, tag = 'output window, operand 0']
    #allocation3 [shape = 's32[2]{0}', space=sflag, size = 0x8, scoped, tag = 'scoped memory for downsample.1']
    %9 = vsyncpa [#allocation3], 0
    %s10 = scalar_lea.sflag [#allocation3], 1
    %11 = vsyncpa %s10, 0
    loop: start=0, step=1, limit=4
    $region2: #{downsample.1} parent=1 // loop_pre_header
      _
    $region3: #{downsample.1} parent=1 // loop_header
      %s13 = sphi 0, %s17
      %p14 = scmp.ge.s32.totalorder %s13, 4
      %s23 = sphi 0, %s25
      %s26 = sphi 0, %s23
      %s27 = sphi 0, %s26
      %s43 = sphi 0, %s27
      %s49 = sphi 0, %s51
      %s52 = sphi 0, %s49
      %s53 = sphi 0, %s52
      %s69 = sphi 0, %s53
      %s73 = sphi 0, %s73
      %s75 = sphi 0, %s73
      %s76 = sphi 0, %s75
      %s90 = sphi 0, %s76
      %s94 = sphi 0, %s94
      %s96 = sphi 0, %s94
      %s97 = sphi 0, %s96
      %s111 = sphi 0, %s97
      %s117 = sphi 0, %s119
      %s120 = sphi 0, %s117
      %s121 = sphi 0, %s120
      %s137 = sphi 0, %s121
    $region4: #{downsample.1} parent=1 // loop_header_branch
      %16 = sbr.rel (%p14) target = $region8
    $region5: #{downsample.1} parent=1 // loop_body
      %s18 = ssub.s32 %s13, 1
      %s19 = ssub.s32 %s13, 2
      %s20 = sadd.s32 %s13, 1
      %s21 = ssub.s32 %s13, %s20
      %p22 = scmp.eq.s32.totalorder %s21, 0
      %s24 = sadd.s32 %s23, 1
      %s25 = scalar_select %p22, %s23, %s24
      %p28 = pneg %p22
      %p29 = scmp.eq.s32.totalorder %s13, 1
      %p30 = por %p28, %p29
      %p31 = scmp.ne.s32.totalorder %s23, %s26
      %p32 = scmp.eq.s32.totalorder %s13, 0
      %p33 = por %p31, %p32
      %p34 = scmp.ne.s32.totalorder %s23, %s26
      %p35 = scmp.eq.s32.totalorder %s18, 1
      %p36 = por %p34, %p35
      %p37 = scmp.ne.s32.totalorder %s26, %s27
      %p38 = scmp.eq.s32.totalorder %s18, 0
      %p39 = por %p37, %p38
      %p40 = scmp.ne.s32.totalorder %s26, %s27
      %p41 = scmp.eq.s32.totalorder %s19, 1
      %p42 = por %p40, %p41
      %p44 = scmp.ne.s32.totalorder %s27, %s43
      %p45 = scmp.eq.s32.totalorder %s19, 0
      %p46 = por %p44, %p45
      %s47 = ssub.s32 %s13, %s20
      %p48 = scmp.eq.s32.totalorder %s47, 0
      %s50 = sadd.s32 %s49, 1
      %s51 = scalar_select %p48, %s49, %s50
      %p54 = pneg %p48
      %p55 = scmp.eq.s32.totalorder %s13, 1
      %p56 = por %p54, %p55
      %p57 = scmp.ne.s32.totalorder %s49, %s52
      %p58 = scmp.eq.s32.totalorder %s13, 0
      %p59 = por %p57, %p58
      %p60 = scmp.ne.s32.totalorder %s49, %s52
      %p61 = scmp.eq.s32.totalorder %s18, 1
      %p62 = por %p60, %p61
      %p63 = scmp.ne.s32.totalorder %s52, %s53
      %p64 = scmp.eq.s32.totalorder %s18, 0
      %p65 = por %p63, %p64
      %p66 = scmp.ne.s32.totalorder %s52, %s53
      %p67 = scmp.eq.s32.totalorder %s19, 1
      %p68 = por %p66, %p67
      %p70 = scmp.ne.s32.totalorder %s53, %s69
      %p71 = scmp.eq.s32.totalorder %s19, 0
      %p72 = por %p70, %p71
      %s74 = sadd.s32 %s73, 1
      %p77 = scmp.eq.s32.totalorder %s13, 1
      %p78 = scmp.ne.s32.totalorder %s73, %s75
      %p79 = scmp.eq.s32.totalorder %s13, 0
      %p80 = por %p78, %p79
      %p81 = scmp.ne.s32.totalorder %s73, %s75
      %p82 = scmp.eq.s32.totalorder %s18, 1
      %p83 = por %p81, %p82
      %p84 = scmp.ne.s32.totalorder %s75, %s76
      %p85 = scmp.eq.s32.totalorder %s18, 0
      %p86 = por %p84, %p85
      %p87 = scmp.ne.s32.totalorder %s75, %s76
      %p88 = scmp.eq.s32.totalorder %s19, 1
      %p89 = por %p87, %p88
      %p91 = scmp.ne.s32.totalorder %s76, %s90
      %p92 = scmp.eq.s32.totalorder %s19, 0
      %p93 = por %p91, %p92
      %s95 = sadd.s32 %s94, 1
      %p98 = scmp.eq.s32.totalorder %s13, 1
      %p99 = scmp.ne.s32.totalorder %s94, %s96
      %p100 = scmp.eq.s32.totalorder %s13, 0
      %p101 = por %p99, %p100
      %p102 = scmp.ne.s32.totalorder %s94, %s96
      %p103 = scmp.eq.s32.totalorder %s18, 1
      %p104 = por %p102, %p103
      %p105 = scmp.ne.s32.totalorder %s96, %s97
      %p106 = scmp.eq.s32.totalorder %s18, 0
      %p107 = por %p105, %p106
      %p108 = scmp.ne.s32.totalorder %s96, %s97
      %p109 = scmp.eq.s32.totalorder %s19, 1
      %p110 = por %p108, %p109
      %p112 = scmp.ne.s32.totalorder %s97, %s111
      %p113 = scmp.eq.s32.totalorder %s19, 0
      %p114 = por %p112, %p113
      %s115 = ssub.s32 %s13, %s20
      %p116 = scmp.eq.s32.totalorder %s115, 0
      %s118 = sadd.s32 %s117, 1
      %s119 = scalar_select %p116, %s117, %s118
      %p122 = pneg %p116
      %p123 = scmp.eq.s32.totalorder %s13, 1
      %p124 = por %p122, %p123
      %p125 = scmp.ne.s32.totalorder %s117, %s120
      %p126 = scmp.eq.s32.totalorder %s13, 0
      %p127 = por %p125, %p126
      %p128 = scmp.ne.s32.totalorder %s117, %s120
      %p129 = scmp.eq.s32.totalorder %s18, 1
      %p130 = por %p128, %p129
      %p131 = scmp.ne.s32.totalorder %s120, %s121
      %p132 = scmp.eq.s32.totalorder %s18, 0
      %p133 = por %p131, %p132
      %p134 = scmp.ne.s32.totalorder %s120, %s121
      %p135 = scmp.eq.s32.totalorder %s19, 1
      %p136 = por %p134, %p135
      %p138 = scmp.ne.s32.totalorder %s121, %s137
      %p139 = scmp.eq.s32.totalorder %s19, 0
      %p140 = por %p138, %p139
      %p141 = scmp.le.s32.totalorder 1, %s13
      %p142 = scmp.lt.s32.totalorder %s13, 3
      %p143 = pnand %p141, %p142
      %p144 = pneg %p143
      // Predicated region
      $region9: #{downsample.1} parent=5 // pred_check
        _
      $region10: #{downsample.1} parent=5 // pred_check_branch
        %146 = sbr.rel (%p143) target = $region12
      $region11: #{downsample.1} parent=5 // pred_region
        %s147 = ssub.s32 %s13, 1
        // Predicated region
        $region13: #{downsample.1} parent=11 // pred_check
          %p148 = pneg %p86
        $region14: #{downsample.1} parent=11 // pred_check_branch
          %150 = sbr.rel (%p148) target = $region16
        $region15: #{downsample.1} parent=11 // pred_region
          _
        $region16: #{downsample.1} parent=11 // pred_fallthru
          _
        // Predicated region
        $region17: #{downsample.1} parent=11 // pred_check
          %p151 = pneg %p107
        $region18: #{downsample.1} parent=11 // pred_check_branch
          %153 = sbr.rel (%p151) target = $region20
        $region19: #{downsample.1} parent=11 // pred_region
          _
        $region20: #{downsample.1} parent=11 // pred_fallthru
          _
      $region12: #{downsample.1} parent=5 // pred_fallthru
        _
      %p154 = scmp.lt.s32.totalorder %s13, 2
      // Predicated region
      $region21: #{downsample.1} parent=5 // pred_check
        %p155 = pneg %p154
      $region22: #{downsample.1} parent=5 // pred_check_branch
        %157 = sbr.rel (%p155) target = $region24
      $region23: #{downsample.1} parent=5 // pred_region
        // Predicated region
        $region25: #{downsample.1} parent=23 // pred_check
          %p158 = pneg %p33
        $region26: #{downsample.1} parent=23 // pred_check_branch
          %160 = sbr.rel (%p158) target = $region28
        $region27: #{downsample.1} parent=23 // pred_region
          %p161 = scmp.lt.s32.totalorder %s13, 1
          %s162 = scalar_select %p161, %s13, 1
          %s163 = smul.addr %s162, 4
          %s164 = scalar_lea.vmem %s0, %s163
        $region28: #{downsample.1} parent=23 // pred_fallthru
          _
        // Predicated region
        $region29: #{downsample.1} parent=23 // pred_check
          %p165 = pneg %p59
        $region30: #{downsample.1} parent=23 // pred_check_branch
          %167 = sbr.rel (%p165) target = $region32
        $region31: #{downsample.1} parent=23 // pred_region
          %p168 = scmp.lt.s32.totalorder %s13, 1
          %s169 = scalar_select %p168, %s13, 1
          %s170 = smul.addr %s169, 4
          %s171 = scalar_lea.vmem %s1, %s170
        $region32: #{downsample.1} parent=23 // pred_fallthru
          _
      $region24: #{downsample.1} parent=5 // pred_fallthru
        _
      %p172 = scmp.le.s32.totalorder 1, %s13
      %p173 = scmp.lt.s32.totalorder %s13, 3
      %p174 = pnand %p172, %p173
      %p175 = pneg %p174
      // Predicated region
      $region33: #{downsample.1} parent=5 // pred_check
        _
      $region34: #{downsample.1} parent=5 // pred_check_branch
        %177 = sbr.rel (%p174) target = $region36
      $region35: #{downsample.1} parent=5 // pred_region
        %s178 = ssub.s32 %s13, 1
        %p179 = scmp.lt.s32.totalorder %s18, 1
        %s180 = scalar_select %p179, %s18, 1
        %s181 = smul.addr %s180, 4
        %s182 = scalar_lea.vmem %s0, %s181
        %p183 = pneg %p39
        %p184 = pneg %p36
        %p185 = scmp.lt.s32.totalorder %s18, 1
        %s186 = scalar_select %p185, %s18, 1
        %s187 = smul.addr %s186, 4
        %s188 = scalar_lea.vmem %s1, %s187
        %p189 = pneg %p65
        %p190 = pneg %p62
        %p191 = pneg %p86
        %p192 = pneg %p83
        %p193 = pneg %p107
        %p194 = pneg %p104
        %p195 = pneg %p133
        %p196 = pneg %p130
        %s197 = sand.u32 %s120, 1
        %s198 = scalar_lea.sflag [#allocation3], %s197
        %s199 = sand.u32 %s120, 1
        %s200 = smul.addr %s199, 4
        %s201 = scalar_lea.vmem [#allocation2], %s200
        %p202 = scmp.lt.s32.totalorder %s18, 1
        %s203 = scalar_select %p202, %s18, 1
        %s204 = smul.addr %s203, 4
        %s205 = scalar_lea.vmem %s0, %s204
        %p206 = scmp.lt.s32.totalorder %s18, 1
        %s207 = scalar_select %p206, %s18, 1
        %s208 = smul.addr %s207, 4
        %s209 = scalar_lea.vmem %s1, %s208
        %v210 = vld [vmem:[%s2] sm:$0xf]
        %v211 = vld [vmem:[%s3] sm:$0xf]
        %v212 = vld [vmem:[%s205] sm:$0xf]
        %v213 = vld [vmem:[%s209] sm:$0xf]
        %215 = vrot.lane.b32.xlu0 %v213, 1
        %v216 = vpop.permute.xlu0 %215
        %vm218 = vcmask 7168
        %v219 = vsel %vm218, 0.0, %v216
        %v221 = vrot.slane %v212, 4
        %vm223 = vcmask 1043456
        %v224 = vsel %vm223, %v219, %v221
        %226 = vset.pattern.permute.xlu0 0
        %227 = vperm.xlu0 %226, %v211
        %v228 = vpop.permute.xlu0 %227
        %vm230 = vcmask 97280
        %v232 = vsel %vm230, %v210, 0
        %v234 = vsel %vm223, %v213, 0
        %236 = vmatpush.msra.mxu0 0.0
        %237 = vmatpush.msra.mxu0 0.0
        %238 = vmatpush.msra.mxu0 0.0
        %239 = vmatpush.msra.mxu0 0.0
        %240 = vmatpush.msra.mxu0 0.0
        %241 = vmatpush.msra.mxu0 0.0
        %242 = vmatpush.msra.mxu0 0.0
        %243 = vmatpush.msra.mxu0 0.0
        %244 = vmatpush.msra.mxu0 0.0
        %245 = vmatpush.msra.mxu0 0.0
        %246 = vmatpush.msra.mxu0 0.0
        %247 = vmatpush.msra.mxu0 0.0
        %248 = vmatpush.msra.mxu0 0.0
        %249 = vmatpush.msra.mxu0 0.0
        %250 = vmatpush.msra.mxu0 %v234
        %251 = vmatpush.msra.mxu0 %v224
        %252 = vmatmul.f32.gmra.mxu0 %v232
        %v253 = vpop.f32.mrf.mxu0
        %v254 = vadd.f32 %v228, %v253
        %255 = vdwg.mxu0
        %vm256 = vcmask 60416
        %257 = vst.msk [vmem:[%s201] sm:$0xf] %vm256, %v254
        %s258 = sand.u32 %s120, 1
        %s259 = scalar_lea.sflag [#allocation3], %s258
        %s260 = sand.u32 %s120, 1
        %s261 = smul.addr %s260, 4
        %s262 = scalar_lea.vmem [#allocation2], %s261
        // Predicated region
        $region37: #{downsample.1} parent=35 // pred_check
          %p263 = pneg %p130
        $region38: #{downsample.1} parent=35 // pred_check_branch
          %265 = sbr.rel (%p263) target = $region40
        $region39: #{downsample.1} parent=35 // pred_region
          %267 = vsyncadd %s259, 0
          %s268 = smul.addr %s18, 4
          %s269 = scalar_lea.hbm %s4, %s268
          %s271 = sshll.u32 %s262, 4
          %s272 = int_to_ptr.vmem [resolvable:$true] %s271
          %s273 = sshll.u32 %s269, 4
          %s274 = int_to_ptr.hbm [resolvable:$true] %s273
          %276 = dma.vmem_to_hbm [thread:$0]  %s272, 64, %s274, %s259
        $region40: #{downsample.1} parent=35 // pred_fallthru
          _
      $region36: #{downsample.1} parent=5 // pred_fallthru
        _
      %p277 = scmp.le.s32.totalorder 2, %s13
      // Predicated region
      $region41: #{downsample.1} parent=5 // pred_check
        %p278 = pneg %p277
      $region42: #{downsample.1} parent=5 // pred_check_branch
        %280 = sbr.rel (%p278) target = $region44
      $region43: #{downsample.1} parent=5 // pred_region
        %s281 = ssub.s32 %s13, 2
        // Predicated region
        $region45: #{downsample.1} parent=43 // pred_check
          %p282 = pneg %p136
        $region46: #{downsample.1} parent=43 // pred_check_branch
          %284 = sbr.rel (%p282) target = $region48
        $region47: #{downsample.1} parent=43 // pred_region
          %s285 = sand.u32 %s121, 1
          %s286 = scalar_lea.sflag [#allocation3], %s285
          %s287 = sand.u32 %s121, 1
          %s288 = smul.addr %s287, 4
          %s289 = scalar_lea.vmem [#allocation2], %s288
          %291 = dma.done %s286, 64
        $region48: #{downsample.1} parent=43 // pred_fallthru
          _
      $region44: #{downsample.1} parent=5 // pred_fallthru
        _
    $region6: #{downsample.1} parent=1 // loop_footer
      %s17 = sadd.s32 1, %s13
    $region7: #{downsample.1} parent=1 // loop_footer_branch
      %12 = sbr.rel target = $region3
    $region8: #{downsample.1} parent=1 // loop_exit
      _
    %292 = vsyncpa [#allocation3], 1
    %s293 = scalar_lea.sflag [#allocation3], 1
    %294 = vsyncpa %s293, 1

</llo_original>
